<compile_context>
chip_gen: v7x
topology: tpu7x:2x2x1
jax: 0.10.0
libtpu: 0.0.40
codegen_flags: <defaults>
</compile_context>

<pallas_src>
import math
from functools import partial

import jax
import jax.numpy as jnp
from jax.experimental import pallas as pl
from jax.experimental.pallas import tpu as pltpu


def _get_pad(size, multiple):
    new_size = math.ceil(size / multiple) * multiple
    pad = new_size - size
    left = pad // 2
    right = pad - left
    return left, right


def _center_pad_kernel(x_ref, o_ref, *, pad_top, pad_bot, pad_left, pad_right, H, W):
    # Block shapes: x_ref = (tb, H, W), o_ref = (tb, H_out, W_out).
    tb, H_out, W_out = o_ref.shape
    dtype = o_ref.dtype
    # Write each output element exactly once. The guards are static Python
    # bools (dead code when a pad is 0); all offsets/sizes are static ints,
    # so every store is a static VMEM slice.
    if pad_top:
        o_ref[:, :pad_top, :] = jnp.zeros((tb, pad_top, W_out), dtype)
    if pad_bot:
        o_ref[:, pad_top + H:, :] = jnp.zeros((tb, pad_bot, W_out), dtype)
    if pad_left:
        o_ref[:, pad_top:pad_top + H, :pad_left] = jnp.zeros((tb, H, pad_left), dtype)
    if pad_right:
        o_ref[:, pad_top:pad_top + H, pad_left + W:] = jnp.zeros((tb, H, pad_right), dtype)
    o_ref[:, pad_top:pad_top + H, pad_left:pad_left + W] = x_ref[...]


def center_padding(x, multiple):
    """Pallas implementation of CenterPadding.forward for a 4-D NCHW input."""
    if x.ndim != 4:
        # TODO(synk): generalize to other ranks (module pads every dim after N, C).
        raise NotImplementedError("center_padding implemented for 4-D NCHW inputs")

    N, C, H, W = x.shape
    pad_top, pad_bot = _get_pad(H, multiple)
    pad_left, pad_right = _get_pad(W, multiple)

    # Fast path: already aligned -> no kernel launch, no identity HBM copy.
    if pad_top == pad_bot == pad_left == pad_right == 0:
        return x

    H_out = H + pad_top + pad_bot
    W_out = W + pad_left + pad_right

    # Collapse N and C (layout-preserving: last two dims untouched) and tile
    # the combined axis with the biggest block that keeps the double-buffered
    # in+out tiles well inside the scoped VMEM limit on every generation.
    NC = N * C
    itemsize = jnp.dtype(x.dtype).itemsize
    bytes_per_slice = (H * W + H_out * W_out) * itemsize
    block_budget = 8 * 1024 * 1024  # per (in+out) block pair; x2 for double buffering
    tb = int(max(1, min(NC, block_budget // max(1, bytes_per_slice))))

    x3 = x.reshape(NC, H, W)

    kernel = partial(
        _center_pad_kernel,
        pad_top=pad_top, pad_bot=pad_bot,
        pad_left=pad_left, pad_right=pad_right,
        H=H, W=W,
    )

    out3 = pl.pallas_call(
        kernel,
        out_shape=jax.ShapeDtypeStruct((NC, H_out, W_out), x.dtype),
        grid=(pl.cdiv(NC, tb),),
        in_specs=[pl.BlockSpec((tb, H, W), lambda i: (i, 0, 0))],
        out_specs=pl.BlockSpec((tb, H_out, W_out), lambda i: (i, 0, 0)),
        compiler_params=pltpu.CompilerParams(
            dimension_semantics=("parallel",),
            vmem_limit_bytes=48 * 1024 * 1024,
        ),
        cost_estimate=pl.CostEstimate(
            flops=0,
            transcendentals=0,
            bytes_accessed=NC * (H * W + H_out * W_out) * itemsize,
        ),
    )(x3)

    return out3.reshape(N, C, H_out, W_out)


if __name__ == "__main__":
    multiple = 8
    key = jax.random.PRNGKey(0)
    k1, k2 = jax.random.split(key)

    # Case 1: both H and W need padding (13 -> 16: left 1, right 2).
    x = jax.random.normal(k1, (2, 4, 13, 13), dtype=jnp.float32)
    out = jax.block_until_ready(center_padding(x, multiple))
    ref = jnp.pad(x, ((0, 0), (0, 0), (1, 2), (1, 2)))
    assert out.shape == ref.shape
    assert jnp.array_equal(out, ref)

    # Case 2: only W needs padding (H already a multiple of 8).
    y = jax.random.normal(k2, (2, 4, 16, 13), dtype=jnp.float32)
    out2 = jax.block_until_ready(center_padding(y, multiple))
    ref2 = jnp.pad(y, ((0, 0), (0, 0), (0, 0), (1, 2)))
    assert out2.shape == ref2.shape
    assert jnp.array_equal(out2, ref2)

    # Case 3: fast path, no padding required.
    z = jax.random.normal(key, (2, 4, 16, 16), dtype=jnp.float32)
    out3 = jax.block_until_ready(center_padding(z, multiple))
    assert out3.shape == z.shape
    assert jnp.array_equal(out3, z)

    print("KERNEL_OK")
</pallas_src>

<mosaic_0001>
module attributes {stable_mosaic.version = 11 : i64} {
  func.func @_center_pad_kernel(%arg0: i32, %arg1: memref<8x13x13xf32, #tpu.memory_space<vmem>>, %arg2: memref<8x16x16xf32, #tpu.memory_space<vmem>>) attributes {dimension_semantics = [#tpu.dimension_semantics<parallel>], iteration_bounds = array<i64: 1>, scalar_prefetch = 0 : i64, scratch_operands = 0 : i64, tpu.core_type = #tpu.core_type<tc>, window_params = [{transform_indices = @transform_0, window_bounds = array<i64: 8, 13, 13>}, {transform_indices = @transform_1, window_bounds = array<i64: 8, 16, 16>}]} {
    %cst = arith.constant 0.000000e+00 : f32
    %0 = vector.broadcast %cst : f32 to vector<8x1x16xf32>
    %c0 = arith.constant 0 : index
    %c0_0 = arith.constant 0 : index
    %c0_1 = arith.constant 0 : index
    %1 = vector.load %arg2[%c0, %c0_0, %c0_1] : memref<8x16x16xf32, #tpu.memory_space<vmem>>, vector<8x1x16xf32>
    tpu.vector_store %arg2[%c0, %c0_0, %c0_1], %0 {strides = array<i32>} : memref<8x16x16xf32, #tpu.memory_space<vmem>>, vector<8x1x16xf32>,
    %cst_2 = arith.constant 0.000000e+00 : f32
    %2 = vector.broadcast %cst_2 : f32 to vector<8x2x16xf32>
    %c0_3 = arith.constant 0 : index
    %c14 = arith.constant 14 : index
    %c0_4 = arith.constant 0 : index
    %3 = vector.load %arg2[%c0_3, %c14, %c0_4] : memref<8x16x16xf32, #tpu.memory_space<vmem>>, vector<8x2x16xf32>
    tpu.vector_store %arg2[%c0_3, %c14, %c0_4], %2 {strides = array<i32>} : memref<8x16x16xf32, #tpu.memory_space<vmem>>, vector<8x2x16xf32>,
    %cst_5 = arith.constant 0.000000e+00 : f32
    %4 = vector.broadcast %cst_5 : f32 to vector<8x13x1xf32>
    %c0_6 = arith.constant 0 : index
    %c1 = arith.constant 1 : index
    %c0_7 = arith.constant 0 : index
    %5 = vector.load %arg2[%c0_6, %c1, %c0_7] : memref<8x16x16xf32, #tpu.memory_space<vmem>>, vector<8x13x1xf32>
    tpu.vector_store %arg2[%c0_6, %c1, %c0_7], %4 {strides = array<i32>} : memref<8x16x16xf32, #tpu.memory_space<vmem>>, vector<8x13x1xf32>,
    %cst_8 = arith.constant 0.000000e+00 : f32
    %6 = vector.broadcast %cst_8 : f32 to vector<8x13x2xf32>
    %c0_9 = arith.constant 0 : index
    %c1_10 = arith.constant 1 : index
    %c14_11 = arith.constant 14 : index
    %7 = vector.load %arg2[%c0_9, %c1_10, %c14_11] : memref<8x16x16xf32, #tpu.memory_space<vmem>>, vector<8x13x2xf32>
    tpu.vector_store %arg2[%c0_9, %c1_10, %c14_11], %6 {strides = array<i32>} : memref<8x16x16xf32, #tpu.memory_space<vmem>>, vector<8x13x2xf32>,
    %c0_12 = arith.constant 0 : index
    %c0_13 = arith.constant 0 : index
    %c0_14 = arith.constant 0 : index
    %8 = vector.load %arg1[%c0_12, %c0_13, %c0_14] : memref<8x13x13xf32, #tpu.memory_space<vmem>>, vector<8x13x13xf32>
    %c0_15 = arith.constant 0 : index
    %c1_16 = arith.constant 1 : index
    %c1_17 = arith.constant 1 : index
    %9 = vector.load %arg2[%c0_15, %c1_16, %c1_17] : memref<8x16x16xf32, #tpu.memory_space<vmem>>, vector<8x13x13xf32>
    tpu.vector_store %arg2[%c0_15, %c1_16, %c1_17], %8 {strides = array<i32>} : memref<8x16x16xf32, #tpu.memory_space<vmem>>, vector<8x13x13xf32>,
    return
  }
  func.func @transform_0(%arg0: i32) -> (i32, i32, i32) {
    %c0_i32 = arith.constant 0 : i32
    %c0_i32_0 = arith.constant 0 : i32
    %c0_i32_1 = arith.constant 0 : i32
    return %arg0, %c0_i32, %c0_i32_0 : i32, i32, i32
  }
  func.func @transform_1(%arg0: i32) -> (i32, i32, i32) {
    %c0_i32 = arith.constant 0 : i32
    %c0_i32_0 = arith.constant 0 : i32
    %c0_i32_1 = arith.constant 0 : i32
    return %arg0, %c0_i32, %c0_i32_0 : i32, i32, i32
  }
}

</mosaic_0001>

<llo_original>
// kernel: tpu_custom_call.1
$region0: #{tpu_custom_call.1}
  #allocation0 [shape = 'u32[]', space=smem, size = 0x4, offset = 0x4, fixed_abs, tag = 'smem constant byte address 0x4 - core index']
  #allocation1 [shape = 'u32[144,128]{1,0:T(1,128)}', space=vmem, size = 0x12000, scoped, tag = 'internal scratch']
  %s0 = inlined_call_operand.vmem [shape: f32[8,13,13], index: 0, kind: input, shape index: {}]
  %s1 = inlined_call_operand.hbm [shape: f32[8,16,16], index: 1, kind: output, shape index: {}]
  %s2 = sld [smem:[#allocation0]]
  $region14: #{tpu_custom_call.1} parent=0
    _
  %s4 = ssub.s32 1, %s2
  %s5 = scalar_select 0, %s4, %s2
  $region1: #{tpu_custom_call.1} parent=0
    #allocation2 [shape = 'u8[65536]{0}', space=vmem, size = 0x10000, scoped, tag = 'output window, operand 0, single buffered']
    #allocation3 [shape = 's32[1]{0}', space=sflag, size = 0x4, scoped, tag = 'scoped memory for tpu_custom_call.1']
    %6 = vsyncpa [#allocation3], 0
    // Predicated region
    $region2: #{tpu_custom_call.1} parent=1 // pred_check
      _
    $region3: #{tpu_custom_call.1} parent=1 // pred_check_branch
      %8 = sbr.rel (0) target = $region5
    $region4: #{tpu_custom_call.1} parent=1 // pred_region
      _
    $region5: #{tpu_custom_call.1} parent=1 // pred_fallthru
      _
    %vm9 = vcmask 122880
    %10 = vst.msk [vmem:[#allocation2] sm:$0x1] %vm9, 0.0
    %11 = vst.msk [vmem:[#allocation2 + $0x10] sm:$0x1] %vm9, 0.0
    %12 = vst.msk [vmem:[#allocation2 + $0x20] sm:$0x1] %vm9, 0.0
    %13 = vst.msk [vmem:[#allocation2 + $0x30] sm:$0x1] %vm9, 0.0
    %14 = vst.msk [vmem:[#allocation2 + $0x40] sm:$0x1] %vm9, 0.0
    %15 = vst.msk [vmem:[#allocation2 + $0x50] sm:$0x1] %vm9, 0.0
    %16 = vst.msk [vmem:[#allocation2 + $0x60] sm:$0x1] %vm9, 0.0
    %17 = vst.msk [vmem:[#allocation2 + $0x70] sm:$0x1] %vm9, 0.0
    %vm18 = vcmask 123904
    %19 = vst.msk [vmem:[#allocation2 + $0xe] sm:$0x3] %vm18, 0.0
    %20 = vst.msk [vmem:[#allocation2 + $0x1e] sm:$0x3] %vm18, 0.0
    %21 = vst.msk [vmem:[#allocation2 + $0x2e] sm:$0x3] %vm18, 0.0
    %22 = vst.msk [vmem:[#allocation2 + $0x3e] sm:$0x3] %vm18, 0.0
    %23 = vst.msk [vmem:[#allocation2 + $0x4e] sm:$0x3] %vm18, 0.0
    %24 = vst.msk [vmem:[#allocation2 + $0x5e] sm:$0x3] %vm18, 0.0
    %25 = vst.msk [vmem:[#allocation2 + $0x6e] sm:$0x3] %vm18, 0.0
    %26 = vst.msk [vmem:[#allocation2 + $0x7e] sm:$0x3] %vm18, 0.0
    %vm27 = vcmask 7168
    %28 = vst.msk [vmem:[#allocation2 + $0x1] sm:$0xff] %vm27, 0.0
    %vm29 = vcmask 4096
    %30 = vst.msk [vmem:[#allocation2 + $0x9] sm:$0x1f] %vm29, 0.0
    %31 = vst.msk [vmem:[#allocation2 + $0x11] sm:$0xff] %vm27, 0.0
    %32 = vst.msk [vmem:[#allocation2 + $0x19] sm:$0x1f] %vm29, 0.0
    %33 = vst.msk [vmem:[#allocation2 + $0x21] sm:$0xff] %vm27, 0.0
    %34 = vst.msk [vmem:[#allocation2 + $0x29] sm:$0x1f] %vm29, 0.0
    %35 = vst.msk [vmem:[#allocation2 + $0x31] sm:$0xff] %vm27, 0.0
    %36 = vst.msk [vmem:[#allocation2 + $0x39] sm:$0x1f] %vm29, 0.0
    %37 = vst.msk [vmem:[#allocation2 + $0x41] sm:$0xff] %vm27, 0.0
    %38 = vst.msk [vmem:[#allocation2 + $0x49] sm:$0x1f] %vm29, 0.0
    %39 = vst.msk [vmem:[#allocation2 + $0x51] sm:$0xff] %vm27, 0.0
    %40 = vst.msk [vmem:[#allocation2 + $0x59] sm:$0x1f] %vm29, 0.0
    %41 = vst.msk [vmem:[#allocation2 + $0x61] sm:$0xff] %vm27, 0.0
    %42 = vst.msk [vmem:[#allocation2 + $0x69] sm:$0x1f] %vm29, 0.0
    %43 = vst.msk [vmem:[#allocation2 + $0x71] sm:$0xff] %vm27, 0.0
    %44 = vst.msk [vmem:[#allocation2 + $0x79] sm:$0x1f] %vm29, 0.0
    %vm45 = vcmask 130160
    %46 = vst.msk [vmem:[#allocation2 + $0x1] sm:$0xff] %vm45, 0.0
    %vm47 = vcmask 127088
    %48 = vst.msk [vmem:[#allocation2 + $0x9] sm:$0x1f] %vm47, 0.0
    %49 = vst.msk [vmem:[#allocation2 + $0x11] sm:$0xff] %vm45, 0.0
    %50 = vst.msk [vmem:[#allocation2 + $0x19] sm:$0x1f] %vm47, 0.0
    %51 = vst.msk [vmem:[#allocation2 + $0x21] sm:$0xff] %vm45, 0.0
    %52 = vst.msk [vmem:[#allocation2 + $0x29] sm:$0x1f] %vm47, 0.0
    %53 = vst.msk [vmem:[#allocation2 + $0x31] sm:$0xff] %vm45, 0.0
    %54 = vst.msk [vmem:[#allocation2 + $0x39] sm:$0x1f] %vm47, 0.0
    %55 = vst.msk [vmem:[#allocation2 + $0x41] sm:$0xff] %vm45, 0.0
    %56 = vst.msk [vmem:[#allocation2 + $0x49] sm:$0x1f] %vm47, 0.0
    %57 = vst.msk [vmem:[#allocation2 + $0x51] sm:$0xff] %vm45, 0.0
    %58 = vst.msk [vmem:[#allocation2 + $0x59] sm:$0x1f] %vm47, 0.0
    %59 = vst.msk [vmem:[#allocation2 + $0x61] sm:$0xff] %vm45, 0.0
    %60 = vst.msk [vmem:[#allocation2 + $0x69] sm:$0x1f] %vm47, 0.0
    %61 = vst.msk [vmem:[#allocation2 + $0x71] sm:$0xff] %vm45, 0.0
    %62 = vst.msk [vmem:[#allocation2 + $0x79] sm:$0x1f] %vm47, 0.0
    %v63 = vld [vmem:[%s0] sm:$0xff]
    %v64 = vld [vmem:[%s0 + $0x8] sm:$0x1f]
    %v65 = vld [vmem:[%s0 + $0x10] sm:$0xff]
    %v66 = vld [vmem:[%s0 + $0x18] sm:$0x1f]
    %v67 = vld [vmem:[%s0 + $0x20] sm:$0xff]
    %v68 = vld [vmem:[%s0 + $0x28] sm:$0x1f]
    %v69 = vld [vmem:[%s0 + $0x30] sm:$0xff]
    %v70 = vld [vmem:[%s0 + $0x38] sm:$0x1f]
    %v71 = vld [vmem:[%s0 + $0x40] sm:$0xff]
    %v72 = vld [vmem:[%s0 + $0x48] sm:$0x1f]
    %v73 = vld [vmem:[%s0 + $0x50] sm:$0xff]
    %v74 = vld [vmem:[%s0 + $0x58] sm:$0x1f]
    %v75 = vld [vmem:[%s0 + $0x60] sm:$0xff]
    %v76 = vld [vmem:[%s0 + $0x68] sm:$0x1f]
    %v77 = vld [vmem:[%s0 + $0x70] sm:$0xff]
    %v78 = vld [vmem:[%s0 + $0x78] sm:$0x1f]
    %95 = vrot.lane.b32.xlu0 %v63, 1
    %v96 = vpop.permute.xlu0 %95
    %97 = vrot.lane.b32.xlu0 %v64, 1
    %v98 = vpop.permute.xlu0 %97
    %99 = vrot.lane.b32.xlu0 %v65, 1
    %v100 = vpop.permute.xlu0 %99
    %101 = vrot.lane.b32.xlu0 %v66, 1
    %v102 = vpop.permute.xlu0 %101
    %103 = vrot.lane.b32.xlu0 %v67, 1
    %v104 = vpop.permute.xlu0 %103
    %105 = vrot.lane.b32.xlu0 %v68, 1
    %v106 = vpop.permute.xlu0 %105
    %107 = vrot.lane.b32.xlu0 %v69, 1
    %v108 = vpop.permute.xlu0 %107
    %109 = vrot.lane.b32.xlu0 %v70, 1
    %v110 = vpop.permute.xlu0 %109
    %111 = vrot.lane.b32.xlu0 %v71, 1
    %v112 = vpop.permute.xlu0 %111
    %113 = vrot.lane.b32.xlu0 %v72, 1
    %v114 = vpop.permute.xlu0 %113
    %115 = vrot.lane.b32.xlu0 %v73, 1
    %v116 = vpop.permute.xlu0 %115
    %117 = vrot.lane.b32.xlu0 %v74, 1
    %v118 = vpop.permute.xlu0 %117
    %119 = vrot.lane.b32.xlu0 %v75, 1
    %v120 = vpop.permute.xlu0 %119
    %121 = vrot.lane.b32.xlu0 %v76, 1
    %v122 = vpop.permute.xlu0 %121
    %123 = vrot.lane.b32.xlu0 %v77, 1
    %v124 = vpop.permute.xlu0 %123
    %125 = vrot.lane.b32.xlu0 %v78, 1
    %v126 = vpop.permute.xlu0 %125
    %vm143 = vcmask 113672
    %144 = vst.msk [vmem:[#allocation2 + $0x1] sm:$0xff] %vm143, %v96
    %vm145 = vcmask 110600
    %146 = vst.msk [vmem:[#allocation2 + $0x9] sm:$0x1f] %vm145, %v98
    %147 = vst.msk [vmem:[#allocation2 + $0x11] sm:$0xff] %vm143, %v100
    %148 = vst.msk [vmem:[#allocation2 + $0x19] sm:$0x1f] %vm145, %v102
    %149 = vst.msk [vmem:[#allocation2 + $0x21] sm:$0xff] %vm143, %v104
    %150 = vst.msk [vmem:[#allocation2 + $0x29] sm:$0x1f] %vm145, %v106
    %151 = vst.msk [vmem:[#allocation2 + $0x31] sm:$0xff] %vm143, %v108
    %152 = vst.msk [vmem:[#allocation2 + $0x39] sm:$0x1f] %vm145, %v110
    %153 = vst.msk [vmem:[#allocation2 + $0x41] sm:$0xff] %vm143, %v112
    %154 = vst.msk [vmem:[#allocation2 + $0x49] sm:$0x1f] %vm145, %v114
    %155 = vst.msk [vmem:[#allocation2 + $0x51] sm:$0xff] %vm143, %v116
    %156 = vst.msk [vmem:[#allocation2 + $0x59] sm:$0x1f] %vm145, %v118
    %157 = vst.msk [vmem:[#allocation2 + $0x61] sm:$0xff] %vm143, %v120
    %158 = vst.msk [vmem:[#allocation2 + $0x69] sm:$0x1f] %vm145, %v122
    %159 = vst.msk [vmem:[#allocation2 + $0x71] sm:$0xff] %vm143, %v124
    %160 = vst.msk [vmem:[#allocation2 + $0x79] sm:$0x1f] %vm145, %v126
    // Predicated region
    $region6: #{tpu_custom_call.1} parent=1 // pred_check
      _
    $region7: #{tpu_custom_call.1} parent=1 // pred_check_branch
      %162 = sbr.rel (0) target = $region9
    $region8: #{tpu_custom_call.1} parent=1 // pred_region
      %s164 = ssub.s32 2048, 2048
      %165 = vsyncadd [#allocation3], %s164
      %s166 = sshll.u32 [#allocation2], 4
      %s167 = int_to_ptr.vmem [resolvable:$true] %s166
      %172 = dma.vmem_to_hbm [thread:$0]  %s167, 2048, %s1, [#allocation3], 128, 128, 8
    $region9: #{tpu_custom_call.1} parent=1 // pred_fallthru
      _
    // Predicated region
    $region10: #{tpu_custom_call.1} parent=1 // pred_check
      _
    $region11: #{tpu_custom_call.1} parent=1 // pred_check_branch
      %174 = sbr.rel (0) target = $region13
    $region12: #{tpu_custom_call.1} parent=1 // pred_region
      %175 = dma.done [#allocation3], 2048
    $region13: #{tpu_custom_call.1} parent=1 // pred_fallthru
      _
    %176 = vsyncpa [#allocation3], 1

</llo_original>
